<compile_context>
chip_gen: v5e
topology: v5e:2x2
jax: 0.10.0
libtpu: 0.0.40
codegen_flags: <defaults>
</compile_context>

<pallas_src>
import jax
import jax.numpy as jnp
from jax.experimental import pallas as pl
from jax.experimental.pallas import tpu as pltpu

_MiB = 1024 * 1024
# ~1-4 MiB blocks pipeline at 85%+ of HBM roofline; target the low end so the
# grid keeps several steps even for modest B.
_TARGET_BLOCK_BYTES = 2 * _MiB
# A single batch larger than this switches to the (tm, tk, tn) tiled path.
_MAX_UNTILED_BATCH_BYTES = 4 * _MiB


def _vmem_capacity_bytes():
    """Physical per-core VMEM; falls back to the smallest (v7x, 64 MiB)."""
    try:
        info = pltpu.get_tpu_info()
        cap = getattr(info, "vmem_capacity_bytes", None)
        if cap:
            return int(cap)
    except Exception:
        pass
    return 64 * _MiB


def _largest_divisor_leq(n, cap):
    """Largest divisor of n that is <= cap, preferring one whose quotient
    (the grid length) is even so a 'parallel' batch axis can shard across the
    two v7x TensorCores."""
    cap = max(1, min(n, cap))
    best = 1
    for d in range(cap, 0, -1):
        if n % d != 0:
            continue
        if best == 1:
            best = d
        if (n // d) % 2 == 0:
            return d
    return best


def _pick_tile(dim, candidates):
    """Largest MXU-friendly candidate that divides dim, else the full dim
    (a full-extent block is always legal under the (8,128) rule)."""
    for c in candidates:
        if c <= dim and dim % c == 0:
            return c
    return dim
    # TODO(synk): ragged (non-divisible) P/H tiling with masked edge blocks.


# ---------------------------------------------------------------------------
# Path A: small P — whole (P,P)@(P,H) matmul(s) per grid step.
# ---------------------------------------------------------------------------
def _crowd_interaction_batched_kernel(loc_ref, mot_ref, out_ref):
    # loc_ref: (Bt, P, P), mot_ref: (Bt, P, H), out_ref: (Bt, P, H) in VMEM.
    out_ref[...] = jnp.einsum(
        "bij,bjh->bih",
        loc_ref[...],
        mot_ref[...],
        preferred_element_type=jnp.float32,
    ).astype(out_ref.dtype)
    # TODO(synk): for tiny P (<=16), an unrolled VPU broadcast-mul-add over j
    # (or folding batch into one block-diagonal matmul) would avoid per-batch
    # MXU fill/drain — only worth it if profiling shows the vmatmul slot binding.


# ---------------------------------------------------------------------------
# Path B: large P — (tm, tk, tn) tiling, K as trailing "arbitrary" axis.
# ---------------------------------------------------------------------------
def _crowd_interaction_tiled_kernel(loc_ref, mot_ref, out_ref, acc_ref):
    # loc_ref: (1, tm, tk), mot_ref: (1, tk, tn), out_ref: (1, tm, tn),
    # acc_ref: (tm, tn) f32 scratch, resident across the K axis.
    k = pl.program_id(3)

    @pl.when(k == 0)
    def _():
        acc_ref[...] = jnp.zeros_like(acc_ref)

    acc_ref[...] += jnp.dot(
        loc_ref[0], mot_ref[0], preferred_element_type=jnp.float32
    )

    @pl.when(k == pl.num_programs(3) - 1)
    def _():
        out_ref[0] = acc_ref[...].astype(out_ref.dtype)


def crowd_interaction(location_data, motion_data):
    """Pallas equivalent of torch.bmm(location_data, motion_data)."""
    B, P, P2 = location_data.shape
    assert P == P2, "location_data must be (B, P, P)"
    Bm, Pm, H = motion_data.shape
    assert Bm == B and Pm == P, "motion_data must be (B, P, H)"

    loc_i = jnp.dtype(location_data.dtype).itemsize
    mot_i = jnp.dtype(motion_data.dtype).itemsize
    out_dtype = jnp.promote_types(location_data.dtype, motion_data.dtype)
    out_i = jnp.dtype(out_dtype).itemsize
    # TODO(synk): optionally cast inputs to bf16 here (keeping f32 MXU accum)
    # to halve HBM bytes when the caller's accuracy budget allows it.

    cost = pl.CostEstimate(
        flops=2 * B * P * P * H,
        transcendentals=0,
        bytes_accessed=B * P * P * loc_i + B * P * H * mot_i + B * P * H * out_i,
    )

    vmem_limit_cap = max(16 * _MiB, _vmem_capacity_bytes() // 2)

    per_batch_bytes = P * P * loc_i + P * H * (mot_i + out_i)

    if per_batch_bytes <= _MAX_UNTILED_BATCH_BYTES:
        # ---- Path A: grid over batch blocks, full (P,P)/(P,H) tiles. ----
        bt_cap = max(1, _TARGET_BLOCK_BYTES // per_batch_bytes)
        if B >= 8:
            bt_cap = min(bt_cap, B // 8)   # keep >= ~8 pipelined steps
        elif B >= 2:
            bt_cap = min(bt_cap, B // 2)   # keep >= 2 steps (v7x 2-TC sharding)
        Bt = _largest_divisor_leq(B, bt_cap)
        grid = (B // Bt,)

        block_bytes = Bt * per_batch_bytes
        # 2x for double-buffering (counted exactly once) + 25% + 1 MiB headroom.
        vmem_limit = min(
            vmem_limit_cap, max(4 * _MiB, int(1.25 * 2 * block_bytes) + _MiB)
        )

        return pl.pallas_call(
            _crowd_interaction_batched_kernel,
            out_shape=jax.ShapeDtypeStruct((B, P, H), out_dtype),
            grid_spec=pltpu.PrefetchScalarGridSpec(
                num_scalar_prefetch=0,
                grid=grid,
                in_specs=[
                    pl.BlockSpec((Bt, P, P), lambda b: (b, 0, 0)),
                    pl.BlockSpec((Bt, P, H), lambda b: (b, 0, 0)),
                ],
                out_specs=pl.BlockSpec((Bt, P, H), lambda b: (b, 0, 0)),
            ),
            compiler_params=pltpu.CompilerParams(
                dimension_semantics=("parallel",),
                vmem_limit_bytes=vmem_limit,
            ),
            cost_estimate=cost,
        )(location_data, motion_data)

    # ---- Path B: (tm, tk, tn) tiling with f32 accumulator scratch. ----
    # 256-aligned tm/tn and 512-aligned tk suit the 2x256^2 MXU on v6e/v7x and
    # remain 128-aligned for v5e's 4x128^2 MXU.
    tm = _pick_tile(P, (256, 128, 64, 32, 16, 8))
    tk = _pick_tile(P, (512, 256, 128))
    tn = _pick_tile(H, (256, 128))
    grid = (B, P // tm, H // tn, P // tk)

    block_bytes = tm * tk * loc_i + tk * tn * mot_i + tm * tn * out_i
    acc_bytes = tm * tn * 4
    vmem_limit = min(
        vmem_limit_cap,
        max(4 * _MiB, int(1.25 * (2 * block_bytes + acc_bytes)) + _MiB),
    )

    return pl.pallas_call(
        _crowd_interaction_tiled_kernel,
        out_shape=jax.ShapeDtypeStruct((B, P, H), out_dtype),
        grid_spec=pltpu.PrefetchScalarGridSpec(
            num_scalar_prefetch=0,
            grid=grid,
            in_specs=[
                pl.BlockSpec((1, tm, tk), lambda b, i, j, k: (b, i, k)),
                pl.BlockSpec((1, tk, tn), lambda b, i, j, k: (b, k, j)),
            ],
            out_specs=pl.BlockSpec((1, tm, tn), lambda b, i, j, k: (b, i, j)),
            scratch_shapes=[pltpu.VMEM((tm, tn), jnp.float32)],
        ),
        compiler_params=pltpu.CompilerParams(
            dimension_semantics=("parallel", "parallel", "parallel", "arbitrary"),
            vmem_limit_bytes=vmem_limit,
        ),
        cost_estimate=cost,
    )(location_data, motion_data)


if __name__ == "__main__":
    # Shapes consistent with the module: batch=2, pedestrian_num=8, hidden=32.
    B, P, H = 2, 8, 32
    key = jax.random.PRNGKey(0)
    k1, k2 = jax.random.split(key)
    location_data = jax.random.normal(k1, (B, P, P), dtype=jnp.float32)
    motion_data = jax.random.normal(k2, (B, P, H), dtype=jnp.float32)

    out = crowd_interaction(location_data, motion_data)
    out = jax.block_until_ready(out)

    # Reference check against plain JAX bmm.
    ref = jnp.einsum("bij,bjh->bih", location_data, motion_data)
    assert out.shape == (B, P, H)
    assert jnp.allclose(out, ref, atol=1e-5, rtol=1e-5), "mismatch vs reference bmm"

    print("KERNEL_OK")
</pallas_src>

<mosaic_0001>
module attributes {stable_mosaic.version = 11 : i64} {
  func.func @_crowd_interaction_batched_kernel(%arg0: i32, %arg1: memref<1x8x8xf32, #tpu.memory_space<vmem>>, %arg2: memref<1x8x32xf32, #tpu.memory_space<vmem>>, %arg3: memref<1x8x32xf32, #tpu.memory_space<vmem>>) attributes {dimension_semantics = [#tpu.dimension_semantics<parallel>], iteration_bounds = array<i64: 2>, scalar_prefetch = 0 : i64, scratch_operands = 0 : i64, tpu.core_type = #tpu.core_type<tc>, window_params = [{transform_indices = @transform_0, window_bounds = array<i64: 1, 8, 8>}, {transform_indices = @transform_1, window_bounds = array<i64: 1, 8, 32>}, {transform_indices = @transform_2, window_bounds = array<i64: 1, 8, 32>}]} {
    %c0 = arith.constant 0 : index
    %c0_0 = arith.constant 0 : index
    %c0_1 = arith.constant 0 : index
    %0 = vector.load %arg1[%c0, %c0_0, %c0_1] : memref<1x8x8xf32, #tpu.memory_space<vmem>>, vector<1x8x8xf32>
    %c0_2 = arith.constant 0 : index
    %c0_3 = arith.constant 0 : index
    %c0_4 = arith.constant 0 : index
    %1 = vector.load %arg2[%c0_2, %c0_3, %c0_4] : memref<1x8x32xf32, #tpu.memory_space<vmem>>, vector<1x8x32xf32>
    "tpu.trace_start"() <{level = 10 : i32, message = "bij,bjh->bih"}> : () -> ()
    %cst = arith.constant dense<0.000000e+00> : vector<1x8x32xf32>
    %2 = tpu.matmul %0, %1, %cst {dimension_numbers = #tpu.dot_dimension_numbers<[2], [1], [1], [2], [0, 0, 0, 1, 1, 2], [0], [0]>} : vector<1x8x8xf32>, vector<1x8x32xf32>, vector<1x8x32xf32> -> vector<1x8x32xf32>
    "tpu.trace_stop"() : () -> ()
    %c0_5 = arith.constant 0 : index
    %c0_6 = arith.constant 0 : index
    %c0_7 = arith.constant 0 : index
    %3 = vector.load %arg3[%c0_5, %c0_6, %c0_7] : memref<1x8x32xf32, #tpu.memory_space<vmem>>, vector<1x8x32xf32>
    tpu.vector_store %arg3[%c0_5, %c0_6, %c0_7], %2 {strides = array<i32>} : memref<1x8x32xf32, #tpu.memory_space<vmem>>, vector<1x8x32xf32>,
    return
  }
  func.func @transform_0(%arg0: i32) -> (i32, i32, i32) {
    %c0_i32 = arith.constant 0 : i32
    %c0_i32_0 = arith.constant 0 : i32
    %c0_i32_1 = arith.constant 0 : i32
    return %arg0, %c0_i32, %c0_i32_0 : i32, i32, i32
  }
  func.func @transform_1(%arg0: i32) -> (i32, i32, i32) {
    %c0_i32 = arith.constant 0 : i32
    %c0_i32_0 = arith.constant 0 : i32
    %c0_i32_1 = arith.constant 0 : i32
    return %arg0, %c0_i32, %c0_i32_0 : i32, i32, i32
  }
  func.func @transform_2(%arg0: i32) -> (i32, i32, i32) {
    %c0_i32 = arith.constant 0 : i32
    %c0_i32_0 = arith.constant 0 : i32
    %c0_i32_1 = arith.constant 0 : i32
    return %arg0, %c0_i32, %c0_i32_0 : i32, i32, i32
  }
}

</mosaic_0001>

<llo_original>
// kernel: tpu_custom_call.1
$region0: #{tpu_custom_call.1}
  #allocation0 [shape = 'u32[]', space=smem, size = 0x4, offset = 0x4, fixed_abs, tag = 'smem constant byte address 0x4 - core index']
  #allocation1 [shape = 'u32[72,128]{1,0:T(1,128)}', space=vmem, size = 0x9000, scoped, tag = 'internal scratch']
  %s0 = inlined_call_operand.hbm [shape: f32[2,8,8], index: 0, kind: input, shape index: {}]
  %s1 = inlined_call_operand.hbm [shape: f32[2,8,32], index: 1, kind: input, shape index: {}]
  %s2 = inlined_call_operand.hbm [shape: f32[2,8,32], index: 2, kind: output, shape index: {}]
  %s3 = sld [smem:[#allocation0]]
  $region49: #{tpu_custom_call.1} parent=0
    _
  %s5 = ssub.s32 1, %s3
  %s6 = scalar_select 0, %s5, %s3
  $region1: #{tpu_custom_call.1} parent=0
    #allocation2 [shape = 'u8[8192]{0}', space=vmem, size = 0x2000, scoped, tag = 'input window, operand 0']
    #allocation3 [shape = 's32[2]{0}', space=sflag, size = 0x8, scoped, tag = 'scoped memory for tpu_custom_call.1']
    #allocation4 [shape = 's32[2]{0}', space=sflag, size = 0x8, scoped, tag = 'scoped memory for tpu_custom_call.1']
    #allocation5 [shape = 'u8[8192]{0}', space=vmem, size = 0x2000, scoped, tag = 'input window, operand 1']
    #allocation6 [shape = 's32[2]{0}', space=sflag, size = 0x8, scoped, tag = 'scoped memory for tpu_custom_call.1']
    #allocation7 [shape = 'u8[8192]{0}', space=vmem, size = 0x2000, scoped, tag = 'output window, operand 0']
    %7 = vsyncpa [#allocation3], 0
    %s8 = scalar_lea.sflag [#allocation3], 1
    %9 = vsyncpa %s8, 0
    %10 = vsyncpa [#allocation6], 0
    %s11 = scalar_lea.sflag [#allocation6], 1
    %12 = vsyncpa %s11, 0
    %13 = vsyncpa [#allocation4], 0
    %s14 = scalar_lea.sflag [#allocation4], 1
    %15 = vsyncpa %s14, 0
    loop: start=0, step=1, limit=4
    $region2: #{tpu_custom_call.1} parent=1 // loop_pre_header
      _
    $region3: #{tpu_custom_call.1} parent=1 // loop_header
      %s17 = sphi 0, %s21
      %p18 = scmp.ge.s32.totalorder %s17, 4
      %s27 = sphi 0, %s29
      %s30 = sphi 0, %s27
      %s31 = sphi 0, %s30
      %s47 = sphi 0, %s31
      %s53 = sphi 0, %s55
      %s56 = sphi 0, %s53
      %s57 = sphi 0, %s56
      %s73 = sphi 0, %s57
      %s79 = sphi 0, %s81
      %s82 = sphi 0, %s79
      %s83 = sphi 0, %s82
      %s99 = sphi 0, %s83
    $region4: #{tpu_custom_call.1} parent=1 // loop_header_branch
      %20 = sbr.rel (%p18) target = $region8
    $region5: #{tpu_custom_call.1} parent=1 // loop_body
      %s22 = ssub.s32 %s17, 1
      %s23 = ssub.s32 %s17, 2
      %s24 = sadd.s32 %s17, 1
      %s25 = ssub.s32 %s17, %s24
      %p26 = scmp.eq.s32.totalorder %s25, 0
      %s28 = sadd.s32 %s27, 1
      %s29 = scalar_select %p26, %s27, %s28
      %p32 = pneg %p26
      %p33 = scmp.eq.s32.totalorder %s17, 1
      %p34 = por %p32, %p33
      %p35 = scmp.ne.s32.totalorder %s27, %s30
      %p36 = scmp.eq.s32.totalorder %s17, 0
      %p37 = por %p35, %p36
      %p38 = scmp.ne.s32.totalorder %s27, %s30
      %p39 = scmp.eq.s32.totalorder %s22, 1
      %p40 = por %p38, %p39
      %p41 = scmp.ne.s32.totalorder %s30, %s31
      %p42 = scmp.eq.s32.totalorder %s22, 0
      %p43 = por %p41, %p42
      %p44 = scmp.ne.s32.totalorder %s30, %s31
      %p45 = scmp.eq.s32.totalorder %s23, 1
      %p46 = por %p44, %p45
      %p48 = scmp.ne.s32.totalorder %s31, %s47
      %p49 = scmp.eq.s32.totalorder %s23, 0
      %p50 = por %p48, %p49
      %s51 = ssub.s32 %s17, %s24
      %p52 = scmp.eq.s32.totalorder %s51, 0
      %s54 = sadd.s32 %s53, 1
      %s55 = scalar_select %p52, %s53, %s54
      %p58 = pneg %p52
      %p59 = scmp.eq.s32.totalorder %s17, 1
      %p60 = por %p58, %p59
      %p61 = scmp.ne.s32.totalorder %s53, %s56
      %p62 = scmp.eq.s32.totalorder %s17, 0
      %p63 = por %p61, %p62
      %p64 = scmp.ne.s32.totalorder %s53, %s56
      %p65 = scmp.eq.s32.totalorder %s22, 1
      %p66 = por %p64, %p65
      %p67 = scmp.ne.s32.totalorder %s56, %s57
      %p68 = scmp.eq.s32.totalorder %s22, 0
      %p69 = por %p67, %p68
      %p70 = scmp.ne.s32.totalorder %s56, %s57
      %p71 = scmp.eq.s32.totalorder %s23, 1
      %p72 = por %p70, %p71
      %p74 = scmp.ne.s32.totalorder %s57, %s73
      %p75 = scmp.eq.s32.totalorder %s23, 0
      %p76 = por %p74, %p75
      %s77 = ssub.s32 %s17, %s24
      %p78 = scmp.eq.s32.totalorder %s77, 0
      %s80 = sadd.s32 %s79, 1
      %s81 = scalar_select %p78, %s79, %s80
      %p84 = pneg %p78
      %p85 = scmp.eq.s32.totalorder %s17, 1
      %p86 = por %p84, %p85
      %p87 = scmp.ne.s32.totalorder %s79, %s82
      %p88 = scmp.eq.s32.totalorder %s17, 0
      %p89 = por %p87, %p88
      %p90 = scmp.ne.s32.totalorder %s79, %s82
      %p91 = scmp.eq.s32.totalorder %s22, 1
      %p92 = por %p90, %p91
      %p93 = scmp.ne.s32.totalorder %s82, %s83
      %p94 = scmp.eq.s32.totalorder %s22, 0
      %p95 = por %p93, %p94
      %p96 = scmp.ne.s32.totalorder %s82, %s83
      %p97 = scmp.eq.s32.totalorder %s23, 1
      %p98 = por %p96, %p97
      %p100 = scmp.ne.s32.totalorder %s83, %s99
      %p101 = scmp.eq.s32.totalorder %s23, 0
      %p102 = por %p100, %p101
      %p103 = scmp.le.s32.totalorder 1, %s17
      %p104 = scmp.lt.s32.totalorder %s17, 3
      %p105 = pnand %p103, %p104
      %p106 = pneg %p105
      // Predicated region
      $region9: #{tpu_custom_call.1} parent=5 // pred_check
        _
      $region10: #{tpu_custom_call.1} parent=5 // pred_check_branch
        %108 = sbr.rel (%p105) target = $region12
      $region11: #{tpu_custom_call.1} parent=5 // pred_region
        %s109 = ssub.s32 %s17, 1
      $region12: #{tpu_custom_call.1} parent=5 // pred_fallthru
        _
      %p110 = scmp.lt.s32.totalorder %s17, 2
      // Predicated region
      $region13: #{tpu_custom_call.1} parent=5 // pred_check
        %p111 = pneg %p110
      $region14: #{tpu_custom_call.1} parent=5 // pred_check_branch
        %113 = sbr.rel (%p111) target = $region16
      $region15: #{tpu_custom_call.1} parent=5 // pred_region
        // Predicated region
        $region17: #{tpu_custom_call.1} parent=15 // pred_check
          %p114 = pneg %p37
        $region18: #{tpu_custom_call.1} parent=15 // pred_check_branch
          %116 = sbr.rel (%p114) target = $region20
        $region19: #{tpu_custom_call.1} parent=15 // pred_region
          %s117 = sand.u32 %s27, 1
          %s118 = scalar_lea.sflag [#allocation3], %s117
          %s119 = sand.u32 %s27, 1
          %s120 = smul.addr %s119, 8
          %s121 = scalar_lea.vmem [#allocation2], %s120
          %123 = vsyncadd %s118, 0
          %s124 = smul.addr %s17, 8
          %s125 = scalar_lea.hbm %s0, %s124
          %s127 = sshll.u32 %s125, 4
          %s128 = int_to_ptr.hbm [resolvable:$true] %s127
          %s129 = sshll.u32 %s121, 4
          %s130 = int_to_ptr.vmem [resolvable:$true] %s129
          %132 = dma.hbm_to_vmem [thread:$0]  %s128, 128, %s130, %s118
        $region20: #{tpu_custom_call.1} parent=15 // pred_fallthru
          _
        // Predicated region
        $region21: #{tpu_custom_call.1} parent=15 // pred_check
          %p133 = pneg %p63
        $region22: #{tpu_custom_call.1} parent=15 // pred_check_branch
          %135 = sbr.rel (%p133) target = $region24
        $region23: #{tpu_custom_call.1} parent=15 // pred_region
          %s136 = sand.u32 %s53, 1
          %s137 = scalar_lea.sflag [#allocation6], %s136
          %s138 = sand.u32 %s53, 1
          %s139 = smul.addr %s138, 8
          %s140 = scalar_lea.vmem [#allocation5], %s139
          %142 = vsyncadd %s137, 0
          %s143 = smul.addr %s17, 8
          %s144 = scalar_lea.hbm %s1, %s143
          %s146 = sshll.u32 %s144, 4
          %s147 = int_to_ptr.hbm [resolvable:$true] %s146
          %s148 = sshll.u32 %s140, 4
          %s149 = int_to_ptr.vmem [resolvable:$true] %s148
          %151 = dma.hbm_to_vmem [thread:$0]  %s147, 128, %s149, %s137
        $region24: #{tpu_custom_call.1} parent=15 // pred_fallthru
          _
      $region16: #{tpu_custom_call.1} parent=5 // pred_fallthru
        _
      %p152 = scmp.le.s32.totalorder 1, %s17
      %p153 = scmp.lt.s32.totalorder %s17, 3
      %p154 = pnand %p152, %p153
      %p155 = pneg %p154
      // Predicated region
      $region25: #{tpu_custom_call.1} parent=5 // pred_check
        _
      $region26: #{tpu_custom_call.1} parent=5 // pred_check_branch
        %157 = sbr.rel (%p154) target = $region28
      $region27: #{tpu_custom_call.1} parent=5 // pred_region
        %s158 = ssub.s32 %s17, 1
        %s159 = sand.u32 %s30, 1
        %s160 = scalar_lea.sflag [#allocation3], %s159
        %s161 = sand.u32 %s30, 1
        %s162 = smul.addr %s161, 8
        %s163 = scalar_lea.vmem [#allocation2], %s162
        // Predicated region
        $region29: #{tpu_custom_call.1} parent=27 // pred_check
          %p164 = pneg %p43
        $region30: #{tpu_custom_call.1} parent=27 // pred_check_branch
          %166 = sbr.rel (%p164) target = $region32
        $region31: #{tpu_custom_call.1} parent=27 // pred_region
          %168 = dma.done %s160, 128
        $region32: #{tpu_custom_call.1} parent=27 // pred_fallthru
          _
        %s169 = sand.u32 %s56, 1
        %s170 = scalar_lea.sflag [#allocation6], %s169
        %s171 = sand.u32 %s56, 1
        %s172 = smul.addr %s171, 8
        %s173 = scalar_lea.vmem [#allocation5], %s172
        // Predicated region
        $region33: #{tpu_custom_call.1} parent=27 // pred_check
          %p174 = pneg %p69
        $region34: #{tpu_custom_call.1} parent=27 // pred_check_branch
          %176 = sbr.rel (%p174) target = $region36
        $region35: #{tpu_custom_call.1} parent=27 // pred_region
          %178 = dma.done %s170, 128
        $region36: #{tpu_custom_call.1} parent=27 // pred_fallthru
          _
        %s179 = sand.u32 %s30, 1
        %s180 = scalar_lea.sflag [#allocation3], %s179
        %s181 = sand.u32 %s30, 1
        %s182 = smul.addr %s181, 8
        %s183 = scalar_lea.vmem [#allocation2], %s182
        %p184 = pneg %p43
        %p185 = pneg %p40
        %s186 = sand.u32 %s56, 1
        %s187 = scalar_lea.sflag [#allocation6], %s186
        %s188 = sand.u32 %s56, 1
        %s189 = smul.addr %s188, 8
        %s190 = scalar_lea.vmem [#allocation5], %s189
        %p191 = pneg %p69
        %p192 = pneg %p66
        %p193 = pneg %p95
        %p194 = pneg %p92
        %s195 = sand.u32 %s82, 1
        %s196 = scalar_lea.sflag [#allocation4], %s195
        %s197 = sand.u32 %s82, 1
        %s198 = smul.addr %s197, 8
        %s199 = scalar_lea.vmem [#allocation7], %s198
        %v200 = vld [vmem:[%s163] sm:$0xff]
        %v201 = vld [vmem:[%s173] sm:$0xff]
        %vm202 = vcmask 64512
        %v204 = vsel %vm202, %v200, 0
        %206 = vmatpush.msra.mxu0 0.0
        %207 = vmatpush.msra.mxu0 0.0
        %208 = vmatpush.msra.mxu0 0.0
        %209 = vmatpush.msra.mxu0 0.0
        %210 = vmatpush.msra.mxu0 0.0
        %211 = vmatpush.msra.mxu0 0.0
        %212 = vmatpush.msra.mxu0 0.0
        %213 = vmatpush.msra.mxu0 0.0
        %214 = vmatpush.msra.mxu0 0.0
        %215 = vmatpush.msra.mxu0 0.0
        %216 = vmatpush.msra.mxu0 0.0
        %217 = vmatpush.msra.mxu0 0.0
        %218 = vmatpush.msra.mxu0 0.0
        %219 = vmatpush.msra.mxu0 0.0
        %220 = vmatpush.msra.mxu0 0.0
        %221 = vmatpush.msra.mxu0 %v201
        %222 = vmatmul.f32.gmra.mxu0 %v204
        %v223 = vpop.f32.mrf.mxu0
        %v224 = vadd.f32 0.0, %v223
        %225 = vdwg.mxu0
        %vm226 = vcmask 261120
        %227 = vst.msk [vmem:[%s199] sm:$0xff] %vm226, %v224
        %s228 = sand.u32 %s82, 1
        %s229 = scalar_lea.sflag [#allocation4], %s228
        %s230 = sand.u32 %s82, 1
        %s231 = smul.addr %s230, 8
        %s232 = scalar_lea.vmem [#allocation7], %s231
        // Predicated region
        $region37: #{tpu_custom_call.1} parent=27 // pred_check
          %p233 = pneg %p92
        $region38: #{tpu_custom_call.1} parent=27 // pred_check_branch
          %235 = sbr.rel (%p233) target = $region40
        $region39: #{tpu_custom_call.1} parent=27 // pred_region
          %237 = vsyncadd %s229, 0
          %s238 = smul.addr %s22, 8
          %s239 = scalar_lea.hbm %s2, %s238
          %s241 = sshll.u32 %s232, 4
          %s242 = int_to_ptr.vmem [resolvable:$true] %s241
          %s243 = sshll.u32 %s239, 4
          %s244 = int_to_ptr.hbm [resolvable:$true] %s243
          %246 = dma.vmem_to_hbm [thread:$0]  %s242, 128, %s244, %s229
        $region40: #{tpu_custom_call.1} parent=27 // pred_fallthru
          _
      $region28: #{tpu_custom_call.1} parent=5 // pred_fallthru
        _
      %p247 = scmp.le.s32.totalorder 2, %s17
      // Predicated region
      $region41: #{tpu_custom_call.1} parent=5 // pred_check
        %p248 = pneg %p247
      $region42: #{tpu_custom_call.1} parent=5 // pred_check_branch
        %250 = sbr.rel (%p248) target = $region44
      $region43: #{tpu_custom_call.1} parent=5 // pred_region
        %s251 = ssub.s32 %s17, 2
        // Predicated region
        $region45: #{tpu_custom_call.1} parent=43 // pred_check
          %p252 = pneg %p98
        $region46: #{tpu_custom_call.1} parent=43 // pred_check_branch
          %254 = sbr.rel (%p252) target = $region48
        $region47: #{tpu_custom_call.1} parent=43 // pred_region
          %s255 = sand.u32 %s83, 1
          %s256 = scalar_lea.sflag [#allocation4], %s255
          %s257 = sand.u32 %s83, 1
          %s258 = smul.addr %s257, 8
          %s259 = scalar_lea.vmem [#allocation7], %s258
          %261 = dma.done %s256, 128
        $region48: #{tpu_custom_call.1} parent=43 // pred_fallthru
          _
      $region44: #{tpu_custom_call.1} parent=5 // pred_fallthru
        _
    $region6: #{tpu_custom_call.1} parent=1 // loop_footer
      %s21 = sadd.s32 1, %s17
    $region7: #{tpu_custom_call.1} parent=1 // loop_footer_branch
      %16 = sbr.rel target = $region3
    $region8: #{tpu_custom_call.1} parent=1 // loop_exit
      _
    %262 = vsyncpa [#allocation3], 1
    %s263 = scalar_lea.sflag [#allocation3], 1
    %264 = vsyncpa %s263, 1
    %265 = vsyncpa [#allocation6], 1
    %s266 = scalar_lea.sflag [#allocation6], 1
    %267 = vsyncpa %s266, 1
    %268 = vsyncpa [#allocation4], 1
    %s269 = scalar_lea.sflag [#allocation4], 1
    %270 = vsyncpa %s269, 1

</llo_original>
